<compile_context>
chip_gen: v5e
topology: v5e:2x2
jax: 0.10.0
libtpu: 0.0.40
codegen_flags: <defaults>
</compile_context>

<pallas_src>
import functools

import jax
import jax.numpy as jnp
from jax import lax
from jax.experimental import pallas as pl
from jax.experimental.pallas import tpu as pltpu

_EPS_SQ = 1e-24  # (1e-12)^2 -> matches F.normalize(dim=1, eps=1e-12)


def _cm_fused_kernel(x_ref, xt_ref, feat_ref, tgt_ref,      # inputs
                     ce_ref, ds_ref,                        # outputs
                     m_ref, l_ref, ta_ref,                  # scratch
                     *, inv_temp, tile_n, n_valid, n_padded):
    """One (branch, n-tile) grid step of the fused flash-style cross-entropy."""
    k = pl.program_id(1)
    nk = pl.num_programs(1)

    # Row-normalize the (small) student block; rsqrt goes to the EUP slot.
    x = x_ref[0].astype(jnp.float32)                        # (B, D)
    ssq = jnp.sum(x * x, axis=1, keepdims=True)
    xn = x * lax.rsqrt(jnp.maximum(ssq, _EPS_SQ))

    @pl.when(k == 0)
    def _init():
        m_ref[...] = jnp.full_like(m_ref, -jnp.inf)
        l_ref[...] = jnp.zeros_like(l_ref)
        ta_ref[...] = jnp.zeros_like(ta_ref)
        # Distillation term: MSE(norm(x), norm(x_teacher)).mean(0).sum()
        xt = xt_ref[0].astype(jnp.float32)
        tsq = jnp.sum(xt * xt, axis=1, keepdims=True)
        xtn = xt * lax.rsqrt(jnp.maximum(tsq, _EPS_SQ))
        diff = xn - xtn
        ds_ref[...] = (jnp.sum(diff * diff) / x.shape[0])[None, None, None]

    # Fold 1/temp into the (B, D) activations instead of the (B, N) logits.
    xs = xn * inv_temp
    feat = feat_ref[0].astype(jnp.float32)                  # (D, tile_n), lane-dense
    s = jnp.dot(xs, feat, preferred_element_type=jnp.float32)   # (B, tile_n)

    col = lax.broadcasted_iota(jnp.int32, s.shape, 1) + k * tile_n
    if n_valid != n_padded:
        s = jnp.where(col < n_valid, s, -jnp.inf)           # mask padded columns

    # Online softmax statistics.
    m_prev = m_ref[...]
    m_new = jnp.maximum(m_prev, jnp.max(s, axis=1, keepdims=True))
    alpha = jnp.exp(m_prev - m_new)
    l_ref[...] = alpha * l_ref[...] + jnp.sum(jnp.exp(s - m_new), axis=1,
                                              keepdims=True)
    m_ref[...] = m_new

    # Target logit for rows whose target falls inside this tile.
    # NOTE: out-of-range targets silently contribute 0 (loss == lse), same as
    # the PyTorch cross_entropy precondition; callers must pass valid labels.
    tgt = tgt_ref[...]                                      # (B, 1) int32
    ta_ref[...] += jnp.sum(jnp.where(col == tgt, s, 0.0), axis=1, keepdims=True)

    @pl.when(k == nk - 1)
    def _finalize():
        per_sample = m_ref[...] + jnp.log(l_ref[...]) - ta_ref[...]     # (B, 1)
        ce_ref[...] = (jnp.sum(per_sample)
                       / per_sample.shape[0])[None, None, None]


def _choose_tile_n(n_padded, desired=512):
    """Largest multiple of 128 that divides n_padded and is <= desired."""
    t = min(max(desired, 128), n_padded)
    t -= t % 128
    while n_padded % t != 0:
        t -= 128
    return t


def cluster_memory_part_losses(x_student, x_teacher, banks_dn, targets, *,
                               temp, num_samples, tile_n=512):
    """Fused Pallas call.

    x_student, x_teacher: (3, B, D) float32, branch-stacked part features.
    banks_dn:             (3, D, Npad) memory banks, pre-transposed + padded.
    targets:              (B,) int32 cluster ids in [0, num_samples).
    Returns (ce, distill): two (3,) float32 vectors of per-branch losses.
    """
    three, B, D = x_student.shape
    assert three == 3 and x_teacher.shape == x_student.shape
    _, Db, n_padded = banks_dn.shape
    assert Db == D and n_padded % 128 == 0 and n_padded >= num_samples

    tn = _choose_tile_n(n_padded, tile_n)
    grid = (3, n_padded // tn)

    kernel = functools.partial(
        _cm_fused_kernel,
        inv_temp=1.0 / float(temp), tile_n=tn,
        n_valid=int(num_samples), n_padded=int(n_padded))

    bank_bytes = banks_dn.dtype.itemsize
    # Double-buffered bank tile + small activation / logits / scratch buffers.
    vmem_need = (2 * D * tn * bank_bytes + 8 * B * D * 4 + 8 * B * tn * 4
                 + (1 << 20))
    vmem_limit = int(min(max(vmem_need, 16 * 1024 * 1024), 60 * 1024 * 1024))

    cost = pl.CostEstimate(
        flops=2 * 3 * B * D * n_padded,
        transcendentals=3 * B * n_padded,
        bytes_accessed=int(banks_dn.size * bank_bytes
                           + 2 * x_student.size * 4 + targets.size * 4 + 6 * 4))

    tgt2d = targets.reshape(B, 1).astype(jnp.int32)

    ce, ds = pl.pallas_call(
        kernel,
        out_shape=(jax.ShapeDtypeStruct((3, 1, 1), jnp.float32),
                   jax.ShapeDtypeStruct((3, 1, 1), jnp.float32)),
        grid_spec=pltpu.PrefetchScalarGridSpec(
            num_scalar_prefetch=0,
            grid=grid,
            in_specs=[
                pl.BlockSpec((1, B, D), lambda b, k: (b, 0, 0)),    # student
                pl.BlockSpec((1, B, D), lambda b, k: (b, 0, 0)),    # teacher
                pl.BlockSpec((1, D, tn), lambda b, k: (b, 0, k)),   # bank tile
                pl.BlockSpec((B, 1), lambda b, k: (0, 0)),          # targets
            ],
            out_specs=(
                pl.BlockSpec((1, 1, 1), lambda b, k: (b, 0, 0)),    # CE loss
                pl.BlockSpec((1, 1, 1), lambda b, k: (b, 0, 0)),    # distill
            ),
            scratch_shapes=[pltpu.VMEM((B, 1), jnp.float32)] * 3),
        compiler_params=pltpu.CompilerParams(
            dimension_semantics=("parallel", "arbitrary"),
            vmem_limit_bytes=vmem_limit),
        cost_estimate=cost,
    )(x_student, x_teacher, banks_dn, tgt2d)

    return ce.reshape(3), ds.reshape(3)


class ClusterMemoryPart:
    """JAX/Pallas port of ClusterMemory_part (forward pass only).

    The three memory banks (registered buffers in PyTorch) are stored as a
    single pre-transposed (3, D, Npad) bfloat16 slab: normalized embeddings
    need no more than bf16, which halves HBM traffic of the streaming matmul.
    """

    def __init__(self, num_features, num_samples, temp=0.05, momentum=0.2,
                 use_hard=False, lambda2=0.5, mu=1.0, seed=42,
                 bank_dtype=jnp.bfloat16, tile_n=512):
        self.num_features = num_features
        self.num_samples = num_samples
        self.momentum = momentum
        self.temp = temp
        self.use_hard = use_hard
        self.lambda2 = lambda2
        self.mu = mu
        self.tile_n = tile_n

        n_padded = ((num_samples + 127) // 128) * 128
        self.num_padded = n_padded

        key = jax.random.PRNGKey(seed)
        keys = jax.random.split(key, 3)

        def init_bank(k):
            f = jax.random.normal(k, (num_samples, num_features), jnp.float32)
            return f / jnp.linalg.norm(f, axis=1, keepdims=True)

        banks = jnp.stack([init_bank(k) for k in keys], axis=0)     # (3, N, D)
        banks_dn = jnp.swapaxes(banks, 1, 2)                        # (3, D, N)
        banks_dn = jnp.pad(banks_dn,
                           ((0, 0), (0, 0), (0, n_padded - num_samples)))
        self.banks_dn = banks_dn.astype(bank_dtype)                 # (3, D, Npad)

    def forward(self, inputs, inputs_up, inputs_down,
                inputs_teacher, inputs_up_teacher, inputs_down_teacher,
                targets, epoch):
        # `epoch` only selects the momentum (1.0 vs self.momentum) used by the
        # memory-bank update inside CM.backward; the forward math is identical.
        # TODO(synk): the momentum memory-bank update lives in CM.backward
        # (autograd side effect), so it is not part of this forward kernel.
        del epoch
        x_s = jnp.stack([inputs, inputs_up, inputs_down], axis=0)
        x_t = jnp.stack([inputs_teacher, inputs_up_teacher,
                         inputs_down_teacher], axis=0)
        ce, ds = cluster_memory_part_losses(
            x_s, x_t, self.banks_dn, targets,
            temp=self.temp, num_samples=self.num_samples, tile_n=self.tile_n)
        weights = jnp.array([1.0 - self.lambda2, self.lambda2, self.lambda2],
                            jnp.float32)
        return jnp.sum(weights * (ce + self.mu * ds))


def _reference_loss(module, inputs, inputs_up, inputs_down,
                    inputs_teacher, inputs_up_teacher, inputs_down_teacher,
                    targets):
    """Pure-JAX reference mirroring the PyTorch forward (with the bf16 banks)."""
    banks = module.banks_dn.astype(jnp.float32)     # (3, D, Npad)
    n = module.num_samples

    def branch(x, xt, feat_dn):
        xn = x / jnp.maximum(jnp.linalg.norm(x, axis=1, keepdims=True), 1e-12)
        xtn = xt / jnp.maximum(jnp.linalg.norm(xt, axis=1, keepdims=True), 1e-12)
        logits = (xn @ feat_dn[:, :n]) / module.temp
        logz = jax.nn.logsumexp(logits, axis=1)
        tgt_logit = jnp.take_along_axis(logits, targets[:, None], axis=1)[:, 0]
        ce = jnp.mean(logz - tgt_logit)
        distill = jnp.sum(jnp.mean((xn - xtn) ** 2, axis=0))
        return ce + module.mu * distill

    l0 = branch(inputs, inputs_teacher, banks[0])
    l1 = branch(inputs_up, inputs_up_teacher, banks[1])
    l2 = branch(inputs_down, inputs_down_teacher, banks[2])
    return ((1.0 - module.lambda2) * l0 + module.lambda2 * l1
            + module.lambda2 * l2)


if __name__ == "__main__":
    # Small demo shapes: B=8 (f32 sublane multiple), D=32, N=200 (padded to 256
    # so the kernel exercises two N-tiles plus the padded-column mask).
    B, D, N = 8, 32, 200

    key = jax.random.PRNGKey(0)
    ks = jax.random.split(key, 7)
    inputs = jax.random.normal(ks[0], (B, D), jnp.float32)
    inputs_up = jax.random.normal(ks[1], (B, D), jnp.float32)
    inputs_down = jax.random.normal(ks[2], (B, D), jnp.float32)
    inputs_teacher = jax.random.normal(ks[3], (B, D), jnp.float32)
    inputs_up_teacher = jax.random.normal(ks[4], (B, D), jnp.float32)
    inputs_down_teacher = jax.random.normal(ks[5], (B, D), jnp.float32)
    targets = jax.random.randint(ks[6], (B,), 0, N, jnp.int32)

    module = ClusterMemoryPart(num_features=D, num_samples=N, temp=0.05,
                               momentum=0.2, lambda2=0.5, mu=0.1, tile_n=128)

    loss = module.forward(inputs, inputs_up, inputs_down,
                          inputs_teacher, inputs_up_teacher,
                          inputs_down_teacher, targets, epoch=1)
    loss = jax.block_until_ready(loss)

    ref = _reference_loss(module, inputs, inputs_up, inputs_down,
                          inputs_teacher, inputs_up_teacher,
                          inputs_down_teacher, targets)
    ref = jax.block_until_ready(ref)

    assert jnp.isfinite(loss), "loss is not finite"
    assert jnp.allclose(loss, ref, rtol=1e-4, atol=1e-4), (loss, ref)
    print("KERNEL_OK")
</pallas_src>

<mosaic_0001>
module attributes {stable_mosaic.version = 11 : i64} {
  func.func @_cm_fused_kernel(%arg0: i32, %arg1: i32, %arg2: memref<1x8x32xf32, #tpu.memory_space<vmem>>, %arg3: memref<1x8x32xf32, #tpu.memory_space<vmem>>, %arg4: memref<1x32x128xbf16, #tpu.memory_space<vmem>>, %arg5: memref<8x1xi32, #tpu.memory_space<vmem>>, %arg6: memref<1x1x1xf32, #tpu.memory_space<vmem>>, %arg7: memref<1x1x1xf32, #tpu.memory_space<vmem>>, %arg8: memref<8x1xf32, #tpu.memory_space<vmem>>, %arg9: memref<8x1xf32, #tpu.memory_space<vmem>>, %arg10: memref<8x1xf32, #tpu.memory_space<vmem>>) attributes {dimension_semantics = [#tpu.dimension_semantics<parallel>, #tpu.dimension_semantics<arbitrary>], iteration_bounds = array<i64: 3, 2>, scalar_prefetch = 0 : i64, scratch_operands = 3 : i64, tpu.core_type = #tpu.core_type<tc>, window_params = [{transform_indices = @transform_0, window_bounds = array<i64: 1, 8, 32>}, {transform_indices = @transform_1, window_bounds = array<i64: 1, 8, 32>}, {transform_indices = @transform_2, window_bounds = array<i64: 1, 32, 128>}, {pipeline_mode = #tpu.pipeline_mode<synchronous>, transform_indices = @transform_3, window_bounds = array<i64: 8, 1>}, {transform_indices = @transform_4, window_bounds = array<i64: 1, 1, 1>}, {transform_indices = @transform_5, window_bounds = array<i64: 1, 1, 1>}]} {
    %c0 = arith.constant 0 : index
    %c0_0 = arith.constant 0 : index
    %c0_1 = arith.constant 0 : index
    %0 = vector.load %arg2[%c0, %c0_0, %c0_1] : memref<1x8x32xf32, #tpu.memory_space<vmem>>, vector<1x8x32xf32>
    %1 = vector.shape_cast %0 : vector<1x8x32xf32> to vector<8x32xf32>
    %2 = arith.mulf %1, %1 : vector<8x32xf32>
    %cst = arith.constant dense<0.000000e+00> : vector<8xf32>
    %3 = vector.multi_reduction <add>, %2, %cst [1] : vector<8x32xf32> to vector<8xf32>
    %4 = vector.shape_cast %3 : vector<8xf32> to vector<8x1xf32>
    %cst_2 = arith.constant 1.000000e-24 : f32
    %5 = vector.broadcast %cst_2 : f32 to vector<8x1xf32>
    %6 = arith.maximumf %4, %5 : vector<8x1xf32>
    %7 = math.rsqrt %6 : vector<8x1xf32>
    %8 = vector.broadcast %7 : vector<8x1xf32> to vector<8x32xf32>
    %9 = arith.mulf %1, %8 : vector<8x32xf32>
    %c0_i32 = arith.constant 0 : i32
    %10 = arith.cmpi eq, %arg1, %c0_i32 : i32
    %11 = arith.extui %10 : i1 to i32
    %c0_i32_3 = arith.constant 0 : i32
    %12 = arith.cmpi ne, %11, %c0_i32_3 : i32
    scf.if %12 {
      %cst_29 = arith.constant 0xFF800000 : f32
      %56 = vector.broadcast %cst_29 : f32 to vector<8x1xf32>
      %c0_30 = arith.constant 0 : index
      %c0_31 = arith.constant 0 : index
      %57 = vector.load %arg8[%c0_30, %c0_31] : memref<8x1xf32, #tpu.memory_space<vmem>>, vector<8x1xf32>
      tpu.vector_store %arg8[%c0_30, %c0_31], %56 {strides = array<i32>} : memref<8x1xf32, #tpu.memory_space<vmem>>, vector<8x1xf32>,
      %cst_32 = arith.constant 0.000000e+00 : f32
      %58 = vector.broadcast %cst_32 : f32 to vector<8x1xf32>
      %c0_33 = arith.constant 0 : index
      %c0_34 = arith.constant 0 : index
      %59 = vector.load %arg9[%c0_33, %c0_34] : memref<8x1xf32, #tpu.memory_space<vmem>>, vector<8x1xf32>
      tpu.vector_store %arg9[%c0_33, %c0_34], %58 {strides = array<i32>} : memref<8x1xf32, #tpu.memory_space<vmem>>, vector<8x1xf32>,
      %cst_35 = arith.constant 0.000000e+00 : f32
      %60 = vector.broadcast %cst_35 : f32 to vector<8x1xf32>
      %c0_36 = arith.constant 0 : index
      %c0_37 = arith.constant 0 : index
      %61 = vector.load %arg10[%c0_36, %c0_37] : memref<8x1xf32, #tpu.memory_space<vmem>>, vector<8x1xf32>
      tpu.vector_store %arg10[%c0_36, %c0_37], %60 {strides = array<i32>} : memref<8x1xf32, #tpu.memory_space<vmem>>, vector<8x1xf32>,
      %c0_38 = arith.constant 0 : index
      %c0_39 = arith.constant 0 : index
      %c0_40 = arith.constant 0 : index
      %62 = vector.load %arg3[%c0_38, %c0_39, %c0_40] : memref<1x8x32xf32, #tpu.memory_space<vmem>>, vector<1x8x32xf32>
      %63 = vector.shape_cast %62 : vector<1x8x32xf32> to vector<8x32xf32>
      %64 = arith.mulf %63, %63 : vector<8x32xf32>
      %cst_41 = arith.constant dense<0.000000e+00> : vector<8xf32>
      %65 = vector.multi_reduction <add>, %64, %cst_41 [1] : vector<8x32xf32> to vector<8xf32>
      %66 = vector.shape_cast %65 : vector<8xf32> to vector<8x1xf32>
      %cst_42 = arith.constant 1.000000e-24 : f32
      %67 = vector.broadcast %cst_42 : f32 to vector<8x1xf32>
      %68 = arith.maximumf %66, %67 : vector<8x1xf32>
      %69 = math.rsqrt %68 : vector<8x1xf32>
      %70 = vector.broadcast %69 : vector<8x1xf32> to vector<8x32xf32>
      %71 = arith.mulf %63, %70 : vector<8x32xf32>
      %72 = arith.subf %9, %71 : vector<8x32xf32>
      %73 = arith.mulf %72, %72 : vector<8x32xf32>
      %74 = vector.shape_cast %73 : vector<8x32xf32> to vector<1x8x32xf32>
      %cst_43 = arith.constant dense<0.000000e+00> : vector<1xf32>
      %75 = vector.multi_reduction <add>, %74, %cst_43 [1, 2] : vector<1x8x32xf32> to vector<1xf32>
      %76 = vector.shape_cast %75 : vector<1xf32> to vector<1x1x1xf32>
      %77 = vector.extract %76[0, 0, 0] : f32 from vector<1x1x1xf32>
      %cst_44 = arith.constant 8.000000e+00 : f32
      %78 = arith.divf %77, %cst_44 : f32
      %79 = vector.broadcast %78 : f32 to vector<1x1x1xf32>
      %c0_45 = arith.constant 0 : index
      %c0_46 = arith.constant 0 : index
      %c0_47 = arith.constant 0 : index
      %80 = vector.load %arg7[%c0_45, %c0_46, %c0_47] : memref<1x1x1xf32, #tpu.memory_space<vmem>>, vector<1x1x1xf32>
      tpu.vector_store %arg7[%c0_45, %c0_46, %c0_47], %79 {strides = array<i32>} : memref<1x1x1xf32, #tpu.memory_space<vmem>>, vector<1x1x1xf32>,
    } else {
    }
    %cst_4 = arith.constant 2.000000e+01 : f32
    %13 = vector.broadcast %cst_4 : f32 to vector<8x32xf32>
    %14 = arith.mulf %9, %13 : vector<8x32xf32>
    %c0_5 = arith.constant 0 : index
    %c0_6 = arith.constant 0 : index
    %c0_7 = arith.constant 0 : index
    %15 = vector.load %arg4[%c0_5, %c0_6, %c0_7] : memref<1x32x128xbf16, #tpu.memory_space<vmem>>, vector<1x32x128xbf16>
    %16 = vector.shape_cast %15 : vector<1x32x128xbf16> to vector<32x128xbf16>
    %17 = arith.extf %16 : vector<32x128xbf16> to vector<32x128xf32>
    %cst_8 = arith.constant dense<0.000000e+00> : vector<8x128xf32>
    %18 = tpu.matmul %14, %17, %cst_8 {dimension_numbers = #tpu.dot_dimension_numbers<[1], [0], [0], [1], [0, 0, 1, 1], [], []>} : vector<8x32xf32>, vector<32x128xf32>, vector<8x128xf32> -> vector<8x128xf32>
    %19 = tpu.iota {dimensions = array<i32: 1>} : vector<8x128xi32>
    %c128_i32 = arith.constant 128 : i32
    %20 = arith.muli %arg1, %c128_i32 : i32
    %21 = vector.broadcast %20 : i32 to vector<8x128xi32>
    %22 = arith.addi %19, %21 : vector<8x128xi32>
    %c200_i32 = arith.constant 200 : i32
    %23 = vector.broadcast %c200_i32 : i32 to vector<8x128xi32>
    %24 = arith.cmpi slt, %22, %23 : vector<8x128xi32>
    %cst_9 = arith.constant 0xFF800000 : f32
    %25 = vector.broadcast %cst_9 : f32 to vector<8x128xf32>
    %26 = arith.select %24, %18, %25 : vector<8x128xi1>, vector<8x128xf32>
    %c0_10 = arith.constant 0 : index
    %c0_11 = arith.constant 0 : index
    %27 = vector.load %arg8[%c0_10, %c0_11] : memref<8x1xf32, #tpu.memory_space<vmem>>, vector<8x1xf32>
    %cst_12 = arith.constant dense<0xFF800000> : vector<8xf32>
    %28 = vector.multi_reduction <maximumf>, %26, %cst_12 [1] : vector<8x128xf32> to vector<8xf32>
    %29 = vector.shape_cast %28 : vector<8xf32> to vector<8x1xf32>
    %30 = arith.maximumf %27, %29 : vector<8x1xf32>
    %31 = arith.subf %27, %30 : vector<8x1xf32>
    %32 = math.exp %31 : vector<8x1xf32>
    %c0_13 = arith.constant 0 : index
    %c0_14 = arith.constant 0 : index
    %33 = vector.load %arg9[%c0_13, %c0_14] : memref<8x1xf32, #tpu.memory_space<vmem>>, vector<8x1xf32>
    %34 = arith.mulf %32, %33 : vector<8x1xf32>
    %35 = vector.broadcast %30 : vector<8x1xf32> to vector<8x128xf32>
    %36 = arith.subf %26, %35 : vector<8x128xf32>
    %37 = math.exp %36 : vector<8x128xf32>
    %cst_15 = arith.constant dense<0.000000e+00> : vector<8xf32>
    %38 = vector.multi_reduction <add>, %37, %cst_15 [1] : vector<8x128xf32> to vector<8xf32>
    %39 = vector.shape_cast %38 : vector<8xf32> to vector<8x1xf32>
    %40 = arith.addf %34, %39 : vector<8x1xf32>
    %c0_16 = arith.constant 0 : index
    %c0_17 = arith.constant 0 : index
    %41 = vector.load %arg9[%c0_16, %c0_17] : memref<8x1xf32, #tpu.memory_space<vmem>>, vector<8x1xf32>
    tpu.vector_store %arg9[%c0_16, %c0_17], %40 {strides = array<i32>} : memref<8x1xf32, #tpu.memory_space<vmem>>, vector<8x1xf32>,
    %c0_18 = arith.constant 0 : index
    %c0_19 = arith.constant 0 : index
    %42 = vector.load %arg8[%c0_18, %c0_19] : memref<8x1xf32, #tpu.memory_space<vmem>>, vector<8x1xf32>
    tpu.vector_store %arg8[%c0_18, %c0_19], %30 {strides = array<i32>} : memref<8x1xf32, #tpu.memory_space<vmem>>, vector<8x1xf32>,
    %c0_20 = arith.constant 0 : index
    %c0_21 = arith.constant 0 : index
    %43 = vector.load %arg5[%c0_20, %c0_21] : memref<8x1xi32, #tpu.memory_space<vmem>>, vector<8x1xi32>
    %c0_22 = arith.constant 0 : index
    %c0_23 = arith.constant 0 : index
    %44 = vector.load %arg10[%c0_22, %c0_23] : memref<8x1xf32, #tpu.memory_space<vmem>>, vector<8x1xf32>
    %45 = vector.broadcast %43 : vector<8x1xi32> to vector<8x128xi32>
    %46 = arith.cmpi eq, %22, %45 : vector<8x128xi32>
    %cst_24 = arith.constant 0.000000e+00 : f32
    %47 = vector.broadcast %cst_24 : f32 to vector<8x128xf32>
    %48 = arith.select %46, %26, %47 : vector<8x128xi1>, vector<8x128xf32>
    %cst_25 = arith.constant dense<0.000000e+00> : vector<8xf32>
    %49 = vector.multi_reduction <add>, %48, %cst_25 [1] : vector<8x128xf32> to vector<8xf32>
    %50 = vector.shape_cast %49 : vector<8xf32> to vector<8x1xf32>
    %51 = arith.addf %44, %50 : vector<8x1xf32>
    %c0_26 = arith.constant 0 : index
    %c0_27 = arith.constant 0 : index
    %52 = vector.load %arg10[%c0_26, %c0_27] : memref<8x1xf32, #tpu.memory_space<vmem>>, vector<8x1xf32>
    tpu.vector_store %arg10[%c0_26, %c0_27], %51 {strides = array<i32>} : memref<8x1xf32, #tpu.memory_space<vmem>>, vector<8x1xf32>,
    %c1_i32 = arith.constant 1 : i32
    %53 = arith.cmpi eq, %arg1, %c1_i32 : i32
    %54 = arith.extui %53 : i1 to i32
    %c0_i32_28 = arith.constant 0 : i32
    %55 = arith.cmpi ne, %54, %c0_i32_28 : i32
    scf.if %55 {
      %c0_29 = arith.constant 0 : index
      %c0_30 = arith.constant 0 : index
      %56 = vector.load %arg8[%c0_29, %c0_30] : memref<8x1xf32, #tpu.memory_space<vmem>>, vector<8x1xf32>
      %c0_31 = arith.constant 0 : index
      %c0_32 = arith.constant 0 : index
      %57 = vector.load %arg9[%c0_31, %c0_32] : memref<8x1xf32, #tpu.memory_space<vmem>>, vector<8x1xf32>
      %58 = math.log %57 : vector<8x1xf32>
      %59 = arith.addf %56, %58 : vector<8x1xf32>
      %c0_33 = arith.constant 0 : index
      %c0_34 = arith.constant 0 : index
      %60 = vector.load %arg10[%c0_33, %c0_34] : memref<8x1xf32, #tpu.memory_space<vmem>>, vector<8x1xf32>
      %61 = arith.subf %59, %60 : vector<8x1xf32>
      %62 = vector.shape_cast %61 : vector<8x1xf32> to vector<1x8x1xf32>
      %cst_35 = arith.constant dense<0.000000e+00> : vector<1xf32>
      %63 = vector.multi_reduction <add>, %62, %cst_35 [1, 2] : vector<1x8x1xf32> to vector<1xf32>
      %64 = vector.shape_cast %63 : vector<1xf32> to vector<1x1x1xf32>
      %65 = vector.extract %64[0, 0, 0] : f32 from vector<1x1x1xf32>
      %cst_36 = arith.constant 8.000000e+00 : f32
      %66 = arith.divf %65, %cst_36 : f32
      %67 = vector.broadcast %66 : f32 to vector<1x1x1xf32>
      %c0_37 = arith.constant 0 : index
      %c0_38 = arith.constant 0 : index
      %c0_39 = arith.constant 0 : index
      %68 = vector.load %arg6[%c0_37, %c0_38, %c0_39] : memref<1x1x1xf32, #tpu.memory_space<vmem>>, vector<1x1x1xf32>
      tpu.vector_store %arg6[%c0_37, %c0_38, %c0_39], %67 {strides = array<i32>} : memref<1x1x1xf32, #tpu.memory_space<vmem>>, vector<1x1x1xf32>,
    } else {
    }
    return
  }
  func.func @transform_0(%arg0: i32, %arg1: i32) -> (i32, i32, i32) {
    %c0_i32 = arith.constant 0 : i32
    %c0_i32_0 = arith.constant 0 : i32
    %c0_i32_1 = arith.constant 0 : i32
    return %arg0, %c0_i32, %c0_i32_0 : i32, i32, i32
  }
  func.func @transform_1(%arg0: i32, %arg1: i32) -> (i32, i32, i32) {
    %c0_i32 = arith.constant 0 : i32
    %c0_i32_0 = arith.constant 0 : i32
    %c0_i32_1 = arith.constant 0 : i32
    return %arg0, %c0_i32, %c0_i32_0 : i32, i32, i32
  }
  func.func @transform_2(%arg0: i32, %arg1: i32) -> (i32, i32, i32) {
    %c0_i32 = arith.constant 0 : i32
    %c0_i32_0 = arith.constant 0 : i32
    return %arg0, %c0_i32, %arg1 : i32, i32, i32
  }
  func.func @transform_3(%arg0: i32, %arg1: i32) -> (i32, i32) {
    %c0_i32 = arith.constant 0 : i32
    %c0_i32_0 = arith.constant 0 : i32
    %c0_i32_1 = arith.constant 0 : i32
    return %c0_i32, %c0_i32_0 : i32, i32
  }
  func.func @transform_4(%arg0: i32, %arg1: i32) -> (i32, i32, i32) {
    %c0_i32 = arith.constant 0 : i32
    %c0_i32_0 = arith.constant 0 : i32
    %c0_i32_1 = arith.constant 0 : i32
    return %arg0, %c0_i32, %c0_i32_0 : i32, i32, i32
  }
  func.func @transform_5(%arg0: i32, %arg1: i32) -> (i32, i32, i32) {
    %c0_i32 = arith.constant 0 : i32
    %c0_i32_0 = arith.constant 0 : i32
    %c0_i32_1 = arith.constant 0 : i32
    return %arg0, %c0_i32, %c0_i32_0 : i32, i32, i32
  }
}

</mosaic_0001>

<llo_original>
// kernel: tpu_custom_call.1
$region0: #{tpu_custom_call.1}
  #allocation0 [shape = 'u32[]', space=smem, size = 0x4, offset = 0x4, fixed_abs, tag = 'smem constant byte address 0x4 - core index']
  #allocation1 [shape = 'u32[72,128]{1,0:T(1,128)}', space=vmem, size = 0x9000, scoped, tag = 'internal scratch']
  #allocation2 [shape = 'f32[8,1]{1,0:T(8,128)}', space=vmem, size = 0x1000, scoped, tag = 'scratch operand']
  #allocation3 [shape = 'f32[8,1]{1,0:T(8,128)}', space=vmem, size = 0x1000, scoped, tag = 'scratch operand']
  #allocation4 [shape = 'f32[8,1]{1,0:T(8,128)}', space=vmem, size = 0x1000, scoped, tag = 'scratch operand']
  %s0 = inlined_call_operand.hbm [shape: f32[3,8,32], index: 0, kind: input, shape index: {}]
  %s1 = inlined_call_operand.hbm [shape: f32[3,8,32], index: 1, kind: input, shape index: {}]
  %s2 = inlined_call_operand.hbm [shape: bf16[3,32,256], index: 2, kind: input, shape index: {}]
  %s3 = inlined_call_operand.vmem [shape: s32[8,1], index: 3, kind: input, shape index: {}]
  %s4 = inlined_call_operand.vmem [shape: f32[3,1,1], index: 4, kind: output, shape index: {0}]
  %s5 = inlined_call_operand.vmem [shape: f32[3,1,1], index: 5, kind: output, shape index: {1}]
  %6 = xla_tuple %s4, %s5
  %s7 = sld [smem:[#allocation0]]
  $region77: #{tpu_custom_call.1} parent=0
    _
  %s9 = ssub.s32 1, %s7
  %s10 = scalar_select 0, %s9, %s7
  $region1: #{tpu_custom_call.1} parent=0
    #allocation5 [shape = 'u8[8192]{0}', space=vmem, size = 0x2000, scoped, tag = 'input window, operand 0']
    #allocation6 [shape = 's32[2]{0}', space=sflag, size = 0x8, scoped, tag = 'scoped memory for tpu_custom_call.1']
    #allocation7 [shape = 'u8[8192]{0}', space=vmem, size = 0x2000, scoped, tag = 'input window, operand 1']
    #allocation8 [shape = 's32[2]{0}', space=sflag, size = 0x8, scoped, tag = 'scoped memory for tpu_custom_call.1']
    #allocation9 [shape = 'u8[16384]{0}', space=vmem, size = 0x4000, scoped, tag = 'input window, operand 2']
    %11 = vsyncpa [#allocation6], 0
    %s12 = scalar_lea.sflag [#allocation6], 1
    %13 = vsyncpa %s12, 0
    %14 = vsyncpa [#allocation8], 0
    %s15 = scalar_lea.sflag [#allocation8], 1
    %16 = vsyncpa %s15, 0
    loop: start=0, step=1, limit=8
    $region2: #{tpu_custom_call.1} parent=1 // loop_pre_header
      _
    $region3: #{tpu_custom_call.1} parent=1 // loop_header
      %s18 = sphi 0, %s22
      %p19 = scmp.ge.s32.totalorder %s18, 8
      %s25 = sphi 0, %s37
      %s26 = sphi 0, %s33
      %s27 = sphi 0, %s25
      %s28 = sphi 0, %s26
      %s29 = sphi 0, %s27
      %s30 = sphi 0, %s28
      %s40 = sphi 0, %s42
      %s43 = sphi 0, %s40
      %s44 = sphi 0, %s43
      %s60 = sphi 0, %s44
      %s66 = sphi 0, %s68
      %s69 = sphi 0, %s66
      %s70 = sphi 0, %s69
      %s86 = sphi 0, %s70
      %s94 = sphi 0, %s96
      %s97 = sphi 0, %s94
      %s98 = sphi 0, %s97
      %s114 = sphi 0, %s98
      %s118 = sphi 0, %s118
      %s120 = sphi 0, %s118
      %s121 = sphi 0, %s120
      %s135 = sphi 0, %s121
      %s141 = sphi 0, %s143
      %s144 = sphi 0, %s141
      %s145 = sphi 0, %s144
      %s161 = sphi 0, %s145
      %s167 = sphi 0, %s169
      %s170 = sphi 0, %s167
      %s171 = sphi 0, %s170
      %s187 = sphi 0, %s171
    $region4: #{tpu_custom_call.1} parent=1 // loop_header_branch
      %21 = sbr.rel (%p19) target = $region8
    $region5: #{tpu_custom_call.1} parent=1 // loop_body
      %s23 = ssub.s32 %s18, 1
      %s24 = ssub.s32 %s18, 2
      %s31 = sadd.s32 1, %s26
      %p32 = scmp.ge.s32.totalorder %s31, 2
      %s33 = scalar_select %p32, 0, %s31
      %s34 = sadd.s32 1, %s25
      %s35 = scalar_select %p32, %s34, %s25
      %p36 = scmp.ge.s32.totalorder %s35, 3
      %s37 = scalar_select %p36, 0, %s35
      %s38 = ssub.s32 %s25, %s37
      %p39 = scmp.eq.s32.totalorder %s38, 0
      %s41 = sadd.s32 %s40, 1
      %s42 = scalar_select %p39, %s40, %s41
      %p45 = pneg %p39
      %p46 = scmp.eq.s32.totalorder %s18, 5
      %p47 = por %p45, %p46
      %p48 = scmp.ne.s32.totalorder %s40, %s43
      %p49 = scmp.eq.s32.totalorder %s18, 0
      %p50 = por %p48, %p49
      %p51 = scmp.ne.s32.totalorder %s40, %s43
      %p52 = scmp.eq.s32.totalorder %s23, 5
      %p53 = por %p51, %p52
      %p54 = scmp.ne.s32.totalorder %s43, %s44
      %p55 = scmp.eq.s32.totalorder %s23, 0
      %p56 = por %p54, %p55
      %p57 = scmp.ne.s32.totalorder %s43, %s44
      %p58 = scmp.eq.s32.totalorder %s24, 5
      %p59 = por %p57, %p58
      %p61 = scmp.ne.s32.totalorder %s44, %s60
      %p62 = scmp.eq.s32.totalorder %s24, 0
      %p63 = por %p61, %p62
      %s64 = ssub.s32 %s25, %s37
      %p65 = scmp.eq.s32.totalorder %s64, 0
      %s67 = sadd.s32 %s66, 1
      %s68 = scalar_select %p65, %s66, %s67
      %p71 = pneg %p65
      %p72 = scmp.eq.s32.totalorder %s18, 5
      %p73 = por %p71, %p72
      %p74 = scmp.ne.s32.totalorder %s66, %s69
      %p75 = scmp.eq.s32.totalorder %s18, 0
      %p76 = por %p74, %p75
      %p77 = scmp.ne.s32.totalorder %s66, %s69
      %p78 = scmp.eq.s32.totalorder %s23, 5
      %p79 = por %p77, %p78
      %p80 = scmp.ne.s32.totalorder %s69, %s70
      %p81 = scmp.eq.s32.totalorder %s23, 0
      %p82 = por %p80, %p81
      %p83 = scmp.ne.s32.totalorder %s69, %s70
      %p84 = scmp.eq.s32.totalorder %s24, 5
      %p85 = por %p83, %p84
      %p87 = scmp.ne.s32.totalorder %s70, %s86
      %p88 = scmp.eq.s32.totalorder %s24, 0
      %p89 = por %p87, %p88
      %s90 = ssub.s32 %s25, %s37
      %s91 = ssub.s32 %s26, %s33
      %s92 = sor.u32 %s90, %s91
      %p93 = scmp.eq.s32.totalorder %s92, 0
      %s95 = sadd.s32 %s94, 1
      %s96 = scalar_select %p93, %s94, %s95
      %p99 = pneg %p93
      %p100 = scmp.eq.s32.totalorder %s18, 5
      %p101 = por %p99, %p100
      %p102 = scmp.ne.s32.totalorder %s94, %s97
      %p103 = scmp.eq.s32.totalorder %s18, 0
      %p104 = por %p102, %p103
      %p105 = scmp.ne.s32.totalorder %s94, %s97
      %p106 = scmp.eq.s32.totalorder %s23, 5
      %p107 = por %p105, %p106
      %p108 = scmp.ne.s32.totalorder %s97, %s98
      %p109 = scmp.eq.s32.totalorder %s23, 0
      %p110 = por %p108, %p109
      %p111 = scmp.ne.s32.totalorder %s97, %s98
      %p112 = scmp.eq.s32.totalorder %s24, 5
      %p113 = por %p111, %p112
      %p115 = scmp.ne.s32.totalorder %s98, %s114
      %p116 = scmp.eq.s32.totalorder %s24, 0
      %p117 = por %p115, %p116
      %s119 = sadd.s32 %s118, 1
      %p122 = scmp.eq.s32.totalorder %s18, 5
      %p123 = scmp.ne.s32.totalorder %s118, %s120
      %p124 = scmp.eq.s32.totalorder %s18, 0
      %p125 = por %p123, %p124
      %p126 = scmp.ne.s32.totalorder %s118, %s120
      %p127 = scmp.eq.s32.totalorder %s23, 5
      %p128 = por %p126, %p127
      %p129 = scmp.ne.s32.totalorder %s120, %s121
      %p130 = scmp.eq.s32.totalorder %s23, 0
      %p131 = por %p129, %p130
      %p132 = scmp.ne.s32.totalorder %s120, %s121
      %p133 = scmp.eq.s32.totalorder %s24, 5
      %p134 = por %p132, %p133
      %p136 = scmp.ne.s32.totalorder %s121, %s135
      %p137 = scmp.eq.s32.totalorder %s24, 0
      %p138 = por %p136, %p137
      %s139 = ssub.s32 %s25, %s37
      %p140 = scmp.eq.s32.totalorder %s139, 0
      %s142 = sadd.s32 %s141, 1
      %s143 = scalar_select %p140, %s141, %s142
      %p146 = pneg %p140
      %p147 = scmp.eq.s32.totalorder %s18, 5
      %p148 = por %p146, %p147
      %p149 = scmp.ne.s32.totalorder %s141, %s144
      %p150 = scmp.eq.s32.totalorder %s18, 0
      %p151 = por %p149, %p150
      %p152 = scmp.ne.s32.totalorder %s141, %s144
      %p153 = scmp.eq.s32.totalorder %s23, 5
      %p154 = por %p152, %p153
      %p155 = scmp.ne.s32.totalorder %s144, %s145
      %p156 = scmp.eq.s32.totalorder %s23, 0
      %p157 = por %p155, %p156
      %p158 = scmp.ne.s32.totalorder %s144, %s145
      %p159 = scmp.eq.s32.totalorder %s24, 5
      %p160 = por %p158, %p159
      %p162 = scmp.ne.s32.totalorder %s145, %s161
      %p163 = scmp.eq.s32.totalorder %s24, 0
      %p164 = por %p162, %p163
      %s165 = ssub.s32 %s25, %s37
      %p166 = scmp.eq.s32.totalorder %s165, 0
      %s168 = sadd.s32 %s167, 1
      %s169 = scalar_select %p166, %s167, %s168
      %p172 = pneg %p166
      %p173 = scmp.eq.s32.totalorder %s18, 5
      %p174 = por %p172, %p173
      %p175 = scmp.ne.s32.totalorder %s167, %s170
      %p176 = scmp.eq.s32.totalorder %s18, 0
      %p177 = por %p175, %p176
      %p178 = scmp.ne.s32.totalorder %s167, %s170
      %p179 = scmp.eq.s32.totalorder %s23, 5
      %p180 = por %p178, %p179
      %p181 = scmp.ne.s32.totalorder %s170, %s171
      %p182 = scmp.eq.s32.totalorder %s23, 0
      %p183 = por %p181, %p182
      %p184 = scmp.ne.s32.totalorder %s170, %s171
      %p185 = scmp.eq.s32.totalorder %s24, 5
      %p186 = por %p184, %p185
      %p188 = scmp.ne.s32.totalorder %s171, %s187
      %p189 = scmp.eq.s32.totalorder %s24, 0
      %p190 = por %p188, %p189
      %p191 = scmp.le.s32.totalorder 1, %s18
      %p192 = scmp.lt.s32.totalorder %s18, 7
      %p193 = pnand %p191, %p192
      %p194 = pneg %p193
      // Predicated region
      $region9: #{tpu_custom_call.1} parent=5 // pred_check
        _
      $region10: #{tpu_custom_call.1} parent=5 // pred_check_branch
        %196 = sbr.rel (%p193) target = $region12
      $region11: #{tpu_custom_call.1} parent=5 // pred_region
        %s197 = ssub.s32 %s18, 1
        // Predicated region
        $region13: #{tpu_custom_call.1} parent=11 // pred_check
          %p198 = pneg %p131
        $region14: #{tpu_custom_call.1} parent=11 // pred_check_branch
          %200 = sbr.rel (%p198) target = $region16
        $region15: #{tpu_custom_call.1} parent=11 // pred_region
          _
        $region16: #{tpu_custom_call.1} parent=11 // pred_fallthru
          _
      $region12: #{tpu_custom_call.1} parent=5 // pred_fallthru
        _
      %p201 = scmp.lt.s32.totalorder %s18, 6
      // Predicated region
      $region17: #{tpu_custom_call.1} parent=5 // pred_check
        %p202 = pneg %p201
      $region18: #{tpu_custom_call.1} parent=5 // pred_check_branch
        %204 = sbr.rel (%p202) target = $region20
      $region19: #{tpu_custom_call.1} parent=5 // pred_region
        // Predicated region
        $region21: #{tpu_custom_call.1} parent=19 // pred_check
          %p205 = pneg %p50
        $region22: #{tpu_custom_call.1} parent=19 // pred_check_branch
          %207 = sbr.rel (%p205) target = $region24
        $region23: #{tpu_custom_call.1} parent=19 // pred_region
          %s208 = sand.u32 %s40, 1
          %s209 = scalar_lea.sflag [#allocation6], %s208
          %s210 = sand.u32 %s40, 1
          %s211 = smul.addr %s210, 8
          %s212 = scalar_lea.vmem [#allocation5], %s211
          %214 = vsyncadd %s209, 0
          %s215 = smul.addr %s25, 8
          %s216 = scalar_lea.hbm %s0, %s215
          %s218 = sshll.u32 %s216, 4
          %s219 = int_to_ptr.hbm [resolvable:$true] %s218
          %s220 = sshll.u32 %s212, 4
          %s221 = int_to_ptr.vmem [resolvable:$true] %s220
          %223 = dma.hbm_to_vmem [thread:$0]  %s219, 128, %s221, %s209
        $region24: #{tpu_custom_call.1} parent=19 // pred_fallthru
          _
        // Predicated region
        $region25: #{tpu_custom_call.1} parent=19 // pred_check
          %p224 = pneg %p76
        $region26: #{tpu_custom_call.1} parent=19 // pred_check_branch
          %226 = sbr.rel (%p224) target = $region28
        $region27: #{tpu_custom_call.1} parent=19 // pred_region
          %s227 = sand.u32 %s18, 1
          %s228 = scalar_lea.sflag [#allocation8], %s227
          %s229 = sand.u32 %s66, 1
          %s230 = smul.addr %s229, 8
          %s231 = scalar_lea.vmem [#allocation7], %s230
          %233 = vsyncadd %s228, 0
          %s234 = smul.addr %s25, 8
          %s235 = scalar_lea.hbm %s1, %s234
          %s237 = sshll.u32 %s235, 4
          %s238 = int_to_ptr.hbm [resolvable:$true] %s237
          %s239 = sshll.u32 %s231, 4
          %s240 = int_to_ptr.vmem [resolvable:$true] %s239
          %242 = dma.hbm_to_vmem [thread:$0]  %s238, 128, %s240, %s228
        $region28: #{tpu_custom_call.1} parent=19 // pred_fallthru
          _
        // Predicated region
        $region29: #{tpu_custom_call.1} parent=19 // pred_check
          %p243 = pneg %p104
        $region30: #{tpu_custom_call.1} parent=19 // pred_check_branch
          %245 = sbr.rel (%p243) target = $region32
        $region31: #{tpu_custom_call.1} parent=19 // pred_region
          %s246 = sand.u32 %s18, 1
          %s247 = scalar_lea.sflag [#allocation8], %s246
          %s248 = sand.u32 %s94, 1
          %s249 = smul.addr %s248, 16
          %s250 = scalar_lea.vmem [#allocation9], %s249
          %252 = vsyncadd %s247, 0
          %s253 = smul.addr %s25, 8
          %s254 = sadd.s32 %s26, %s253
          %s255 = smul.addr %s254, 4
          %s256 = scalar_lea.hbm %s2, %s255
          %s257 = sshll.u32 %s256, 4
          %s258 = int_to_ptr.hbm [resolvable:$true] %s257
          %s259 = sshll.u32 %s250, 4
          %s260 = int_to_ptr.vmem [resolvable:$true] %s259
          %265 = dma.hbm_to_vmem [thread:$0]  %s258, 256, %s260, %s247, 128, 64, 4
        $region32: #{tpu_custom_call.1} parent=19 // pred_fallthru
          _
      $region20: #{tpu_custom_call.1} parent=5 // pred_fallthru
        _
      %p266 = scmp.le.s32.totalorder 1, %s18
      %p267 = scmp.lt.s32.totalorder %s18, 7
      %p268 = pnand %p266, %p267
      %p269 = pneg %p268
      // Predicated region
      $region33: #{tpu_custom_call.1} parent=5 // pred_check
        _
      $region34: #{tpu_custom_call.1} parent=5 // pred_check_branch
        %271 = sbr.rel (%p268) target = $region36
      $region35: #{tpu_custom_call.1} parent=5 // pred_region
        %s272 = ssub.s32 %s18, 1
        %s273 = sand.u32 %s43, 1
        %s274 = scalar_lea.sflag [#allocation6], %s273
        %s275 = sand.u32 %s43, 1
        %s276 = smul.addr %s275, 8
        %s277 = scalar_lea.vmem [#allocation5], %s276
        // Predicated region
        $region37: #{tpu_custom_call.1} parent=35 // pred_check
          %p278 = pneg %p56
        $region38: #{tpu_custom_call.1} parent=35 // pred_check_branch
          %280 = sbr.rel (%p278) target = $region40
        $region39: #{tpu_custom_call.1} parent=35 // pred_region
          %282 = dma.done %s274, 128
        $region40: #{tpu_custom_call.1} parent=35 // pred_fallthru
          _
        %s283 = sand.u32 %s23, 1
        %s284 = scalar_lea.sflag [#allocation8], %s283
        %s285 = sand.u32 %s69, 1
        %s286 = smul.addr %s285, 8
        %s287 = scalar_lea.vmem [#allocation7], %s286
        // Predicated region
        $region41: #{tpu_custom_call.1} parent=35 // pred_check
          %p288 = pneg %p82
        $region42: #{tpu_custom_call.1} parent=35 // pred_check_branch
          %290 = sbr.rel (%p288) target = $region44
        $region43: #{tpu_custom_call.1} parent=35 // pred_region
          %292 = dma.done %s284, 128
        $region44: #{tpu_custom_call.1} parent=35 // pred_fallthru
          _
        %s293 = sand.u32 %s23, 1
        %s294 = scalar_lea.sflag [#allocation8], %s293
        %s295 = sand.u32 %s97, 1
        %s296 = smul.addr %s295, 16
        %s297 = scalar_lea.vmem [#allocation9], %s296
        // Predicated region
        $region45: #{tpu_custom_call.1} parent=35 // pred_check
          %p298 = pneg %p110
        $region46: #{tpu_custom_call.1} parent=35 // pred_check_branch
          %300 = sbr.rel (%p298) target = $region48
        $region47: #{tpu_custom_call.1} parent=35 // pred_region
          %302 = dma.done %s294, 256
        $region48: #{tpu_custom_call.1} parent=35 // pred_fallthru
          _
        %s303 = sand.u32 %s43, 1
        %s304 = scalar_lea.sflag [#allocation6], %s303
        %s305 = sand.u32 %s43, 1
        %s306 = smul.addr %s305, 8
        %s307 = scalar_lea.vmem [#allocation5], %s306
        %p308 = pneg %p56
        %p309 = pneg %p53
        %s310 = sand.u32 %s23, 1
        %s311 = scalar_lea.sflag [#allocation8], %s310
        %s312 = sand.u32 %s69, 1
        %s313 = smul.addr %s312, 8
        %s314 = scalar_lea.vmem [#allocation7], %s313
        %p315 = pneg %p82
        %p316 = pneg %p79
        %s317 = sand.u32 %s23, 1
        %s318 = scalar_lea.sflag [#allocation8], %s317
        %s319 = sand.u32 %s97, 1
        %s320 = smul.addr %s319, 16
        %s321 = scalar_lea.vmem [#allocation9], %s320
        %p322 = pneg %p110
        %p323 = pneg %p107
        %p324 = pneg %p131
        %p325 = pneg %p128
        %p326 = pneg %p157
        %p327 = pneg %p154
        %p328 = scmp.lt.s32.totalorder %s27, 2
        %s329 = scalar_select %p328, %s27, 2
        %s330 = scalar_lea.vmem %s4, %s329
        %p331 = pneg %p183
        %p332 = pneg %p180
        %p333 = scmp.lt.s32.totalorder %s27, 2
        %s334 = scalar_select %p333, %s27, 2
        %s335 = scalar_lea.vmem %s5, %s334
        %p336 = scmp.lt.s32.totalorder %s27, 2
        %s337 = scalar_select %p336, %s27, 2
        %s338 = scalar_lea.vmem %s4, %s337
        %p339 = scmp.lt.s32.totalorder %s27, 2
        %s340 = scalar_select %p339, %s27, 2
        %s341 = scalar_lea.vmem %s5, %s340
        %v342 = vld [vmem:[%s277] sm:$0xff]
        %v343 = vmul.f32 %v342, %v342
        %vm344 = vcmask 261120
        %v345 = vsel %vm344, %v343, 0.0
        %346 = vadd.xlane.f32.xlu0 %v345
        %v347 = vpop.xlane.xlu0 %346
        %v348 = vmax.f32 %v347, 1e-24
        %v349 = vrsqrt.pop %v348
        %v350 = vmul.f32 %v349, %v348
        %v351 = vmul.f32 %v350, %v349
        %v352 = vmul.f32 0.5, %v351
        %v353 = vsub.f32 1.5, %v352
        %v354 = vmul.f32 %v349, %v353
        %vm355 = vweird.f32 %v348
        %vm356 = vweird.f32 %v349
        %vm357 = vmor %vm355, %vm356
        %v358 = vsel %vm357, %v349, %v354
        %v359 = vmul.f32 %v342, %v358
        %p360 = scmp.eq.s32.totalorder %s28, 0
        // Predicated region
        $region49: #{tpu_custom_call.1} parent=35 // pred_check
          %p361 = pneg %p360
        $region50: #{tpu_custom_call.1} parent=35 // pred_check_branch
          %363 = sbr.rel (%p361) target = $region52
        $region51: #{tpu_custom_call.1} parent=35 // pred_region
          %vm364 = vcmask 7168
          %365 = vst.msk [vmem:[#allocation2] sm:$0xff] %vm364, -inf
          %366 = vst.msk [vmem:[#allocation3] sm:$0xff] %vm364, 0.0
          %367 = vst.msk [vmem:[#allocation4] sm:$0xff] %vm364, 0.0
          %v368 = vld [vmem:[%s287] sm:$0xff]
          %v369 = vmul.f32 %v368, %v368
          %v370 = vsel %vm344, %v369, 0.0
          %371 = vadd.xlane.f32.xlu0 %v370
          %v372 = vpop.xlane.xlu0 %371
          %v373 = vmax.f32 %v372, 1e-24
          %v374 = vrsqrt.pop %v373
          %v375 = vmul.f32 %v374, %v373
          %v376 = vmul.f32 %v375, %v374
          %v377 = vmul.f32 0.5, %v376
          %v378 = vsub.f32 1.5, %v377
          %v379 = vmul.f32 %v374, %v378
          %vm380 = vweird.f32 %v373
          %vm381 = vweird.f32 %v374
          %vm382 = vmor %vm380, %vm381
          %v383 = vsel %vm382, %v374, %v379
          %v384 = vmul.f32 %v368, %v383
          %v385 = vsub.f32 %v359, %v384
          %v386 = vmul.f32 %v385, %v385
          %v387 = vsel %vm344, %v386, 0.0
          %388 = vadd.xlane.f32.xlu0 %v387
          %v389 = vpop.xlane.xlu0 %388
          %v390 = vrot.slane %v389, 4
          %v391 = vadd.f32 %v389, %v390
          %v392 = vrot.slane %v391, 2
          %v393 = vadd.f32 %v391, %v392
          %v394 = vrot.slane %v393, 1
          %v395 = vadd.f32 %v393, %v394
          %s396 = vtos %v395
          %v397 = vrcp.pop 8.0
          %v398 = vmul.f32 8.0, %v397
          %v399 = vsub.f32 1.0, %v398
          %v400 = vmul.f32 %v397, %v399
          %v401 = vadd.f32 %v397, %v400
          %vm402 = vweird.f32 %v397
          %v403 = vsel %vm402, %v397, %v401
          %s404 = vtos %v403
          %s405 = smul.f32 %s396, %s404
          %v406 = vstv %s405
          %vm407 = vcmask 0
          %408 = vst.msk [vmem:[%s341] sm:$0x1] %vm407, %v406
        $region52: #{tpu_custom_call.1} parent=35 // pred_fallthru
          _
        %v409 = vmul.f32 %v359, 20.0
        %v410 = vld [vmem:[%s297] sm:$0xf]
        %v411 = vld [vmem:[%s297 + $0x4] sm:$0xf]
        %v412 = vld [vmem:[%s297 + $0x8] sm:$0xf]
        %v413 = vld [vmem:[%s297 + $0xc] sm:$0xf]
        %v414 = vunpack.c.l.bf16 %v410
        %v415 = vunpack.c.l.bf16 %v411
        %v416 = vunpack.c.l.bf16 %v412
        %v417 = vunpack.c.l.bf16 %v413
        %v419 = vsel %vm344, %v409, 0
        %421 = vmatpush.msra.mxu0 0.0
        %422 = vmatpush.msra.mxu0 0.0
        %423 = vmatpush.msra.mxu0 0.0
        %424 = vmatpush.msra.mxu0 0.0
        %425 = vmatpush.msra.mxu0 0.0
        %426 = vmatpush.msra.mxu0 0.0
        %427 = vmatpush.msra.mxu0 0.0
        %428 = vmatpush.msra.mxu0 0.0
        %429 = vmatpush.msra.mxu0 0.0
        %430 = vmatpush.msra.mxu0 0.0
        %431 = vmatpush.msra.mxu0 0.0
        %432 = vmatpush.msra.mxu0 0.0
        %433 = vmatpush.msra.mxu0 %v417
        %434 = vmatpush.msra.mxu0 %v416
        %435 = vmatpush.msra.mxu0 %v415
        %436 = vmatpush.msra.mxu0 %v414
        %437 = vmatmul.f32.gmra.mxu0 %v419
        %v438 = vpop.f32.mrf.mxu0
        %v439 = vadd.f32 0.0, %v438
        %440 = vdwg.mxu0
        %v441 = vlaneseq
        %v442 = vand.u32 %v441, 127
        %s443 = smul.u32 %s28, 128
        %v444 = vstv %s443
        %v445 = vadd.s32 %v442, %v444
        %vm446 = vcmp.lt.s32.totalorder %v445, 200
        %v447 = vsel %vm446, %v439, -inf
        %v448 = vld [vmem:[#allocation2] sm:$0xff]
        %449 = vmax.xlane.f32.xlu0 %v447
        %v450 = vpop.xlane.xlu0 %449
        %v451 = vmax.f32 %v448, %v450
        %v452 = vsub.f32 %v448, %v451
        %v453 = vmul.f32 %v452, 1.442695
        %v454 = vpow.pop %v453
        %v455 = vld [vmem:[#allocation3] sm:$0xff]
        %v456 = vmul.f32 %v454, %v455
        %458 = vset.pattern.permute.xlu0 0
        %459 = vperm.xlu0 %458, %v451
        %v460 = vpop.permute.xlu0 %459
        %v462 = vsub.f32 %v447, %v460
        %v463 = vmul.f32 %v462, 1.442695
        %v464 = vpow.pop %v463
        %465 = vadd.xlane.f32.xlu0 %v464
        %v466 = vpop.xlane.xlu0 %465
        %v467 = vadd.f32 %v456, %v466
        %vm468 = vcmask 7168
        %469 = vst.msk [vmem:[#allocation3] sm:$0xff] %vm468, %v467
        %470 = vst.msk [vmem:[#allocation2] sm:$0xff] %vm468, %v451
        %v471 = vld [vmem:[%s3] sm:$0xff]
        %v472 = vld [vmem:[#allocation4] sm:$0xff]
        %473 = vset.pattern.permute.xlu0 0
        %474 = vperm.xlu0 %473, %v471
        %v475 = vpop.permute.xlu0 %474
        %vm476 = vcmp.eq.s32.totalorder %v445, %v475
        %v477 = vsel %vm476, %v447, 0.0
        %478 = vadd.xlane.f32.xlu0 %v477
        %v479 = vpop.xlane.xlu0 %478
        %v480 = vadd.f32 %v472, %v479
        %481 = vst.msk [vmem:[#allocation4] sm:$0xff] %vm468, %v480
        %p482 = scmp.eq.s32.totalorder %s28, 1
        // Predicated region
        $region53: #{tpu_custom_call.1} parent=35 // pred_check
          %p483 = pneg %p482
        $region54: #{tpu_custom_call.1} parent=35 // pred_check_branch
          %485 = sbr.rel (%p483) target = $region56
        $region55: #{tpu_custom_call.1} parent=35 // pred_region
          %v486 = vld [vmem:[#allocation2] sm:$0xff]
          %v487 = vld [vmem:[#allocation3] sm:$0xff]
          %v488 = vlog2.pop %v487
          %v489 = vmul.f32 %v488, 0.6931472
          %v490 = vadd.f32 %v486, %v489
          %v491 = vld [vmem:[#allocation4] sm:$0xff]
          %v492 = vsub.f32 %v490, %v491
          %v493 = vsel %vm468, %v492, 0.0
          %494 = vadd.xlane.f32.xlu0 %v493
          %v495 = vpop.xlane.xlu0 %494
          %v496 = vrot.slane %v495, 4
          %v497 = vadd.f32 %v495, %v496
          %v498 = vrot.slane %v497, 2
          %v499 = vadd.f32 %v497, %v498
          %v500 = vrot.slane %v499, 1
          %v501 = vadd.f32 %v499, %v500
          %s502 = vtos %v501
          %v503 = vrcp.pop 8.0
          %v504 = vmul.f32 8.0, %v503
          %v505 = vsub.f32 1.0, %v504
          %v506 = vmul.f32 %v503, %v505
          %v507 = vadd.f32 %v503, %v506
          %vm508 = vweird.f32 %v503
          %v509 = vsel %vm508, %v503, %v507
          %s510 = vtos %v509
          %s511 = smul.f32 %s502, %s510
          %v512 = vstv %s511
          %vm513 = vcmask 0
          %514 = vst.msk [vmem:[%s338] sm:$0x1] %vm513, %v512
        $region56: #{tpu_custom_call.1} parent=35 // pred_fallthru
          _
        %p515 = scmp.lt.s32.totalorder %s27, 2
        %s516 = scalar_select %p515, %s27, 2
        %s517 = scalar_lea.vmem %s4, %s516
        %p518 = scmp.lt.s32.totalorder %s27, 2
        %s519 = scalar_select %p518, %s27, 2
        %s520 = scalar_lea.vmem %s5, %s519
        // Predicated region
        $region57: #{tpu_custom_call.1} parent=35 // pred_check
          %p521 = pneg %p154
        $region58: #{tpu_custom_call.1} parent=35 // pred_check_branch
          %523 = sbr.rel (%p521) target = $region60
        $region59: #{tpu_custom_call.1} parent=35 // pred_region
          _
        $region60: #{tpu_custom_call.1} parent=35 // pred_fallthru
          _
        // Predicated region
        $region61: #{tpu_custom_call.1} parent=35 // pred_check
          %p524 = pneg %p180
        $region62: #{tpu_custom_call.1} parent=35 // pred_check_branch
          %526 = sbr.rel (%p524) target = $region64
        $region63: #{tpu_custom_call.1} parent=35 // pred_region
          _
        $region64: #{tpu_custom_call.1} parent=35 // pred_fallthru
          _
      $region36: #{tpu_custom_call.1} parent=5 // pred_fallthru
        _
      %p527 = scmp.le.s32.totalorder 2, %s18
      // Predicated region
      $region65: #{tpu_custom_call.1} parent=5 // pred_check
        %p528 = pneg %p527
      $region66: #{tpu_custom_call.1} parent=5 // pred_check_branch
        %530 = sbr.rel (%p528) target = $region68
      $region67: #{tpu_custom_call.1} parent=5 // pred_region
        %s531 = ssub.s32 %s18, 2
        // Predicated region
        $region69: #{tpu_custom_call.1} parent=67 // pred_check
          %p532 = pneg %p160
        $region70: #{tpu_custom_call.1} parent=67 // pred_check_branch
          %534 = sbr.rel (%p532) target = $region72
        $region71: #{tpu_custom_call.1} parent=67 // pred_region
          %p535 = scmp.lt.s32.totalorder %s29, 2
          %s536 = scalar_select %p535, %s29, 2
          %s537 = scalar_lea.vmem %s4, %s536
        $region72: #{tpu_custom_call.1} parent=67 // pred_fallthru
          _
        // Predicated region
        $region73: #{tpu_custom_call.1} parent=67 // pred_check
          %p538 = pneg %p186
        $region74: #{tpu_custom_call.1} parent=67 // pred_check_branch
          %540 = sbr.rel (%p538) target = $region76
        $region75: #{tpu_custom_call.1} parent=67 // pred_region
          %p541 = scmp.lt.s32.totalorder %s29, 2
          %s542 = scalar_select %p541, %s29, 2
          %s543 = scalar_lea.vmem %s5, %s542
        $region76: #{tpu_custom_call.1} parent=67 // pred_fallthru
          _
      $region68: #{tpu_custom_call.1} parent=5 // pred_fallthru
        _
    $region6: #{tpu_custom_call.1} parent=1 // loop_footer
      %s22 = sadd.s32 1, %s18
    $region7: #{tpu_custom_call.1} parent=1 // loop_footer_branch
      %17 = sbr.rel target = $region3
    $region8: #{tpu_custom_call.1} parent=1 // loop_exit
      _
    %544 = vsyncpa [#allocation6], 1
    %s545 = scalar_lea.sflag [#allocation6], 1
    %546 = vsyncpa %s545, 1
    %547 = vsyncpa [#allocation8], 1
    %s548 = scalar_lea.sflag [#allocation8], 1
    %549 = vsyncpa %s548, 1

</llo_original>
